<compile_context>
chip_gen: v6e
topology: v6e:2x2x1
jax: 0.10.0
libtpu: 0.0.40
codegen_flags: <defaults>
</compile_context>

<pallas_src>
import functools

import jax
import jax.numpy as jnp
from jax.experimental import pallas as pl
from jax.experimental.pallas import tpu as pltpu

_LANE = 128
_SUBLANE = 8


def _sublane_multiple(dtype):
    # Sub-32-bit dtypes pack along sublanes: block rows must be a multiple of
    # 8 * (4 bytes / itemsize)  ->  f32: 8, bf16: 16, int8/fp8: 32.
    itemsize = jnp.dtype(dtype).itemsize
    return _SUBLANE * max(1, 4 // max(1, itemsize))


def _chip_defaults():
    """(tile_rows, vmem_limit_bytes, num_tensorcores) per TPU generation."""
    kind = ""
    try:
        kind = jax.devices()[0].device_kind.lower()
    except Exception:
        pass
    if "v7" in kind:
        # 2 TensorCores, only 64 MiB VMEM per core: smaller blocks + headroom.
        return 4096, 48 << 20, 2
    # v5e / v6e: single TensorCore, 128 MiB physical VMEM, but the scoped
    # default is 16/32 MiB -> must raise it explicitly for 4 MiB blocks.
    return 8192, 64 << 20, 1


def _bce_dice_kernel(x_ref, t_ref, o_ref, acc_ref, *,
                     n_valid, n_inner, block_elems, need_mask):
    """Accumulate per-core partial sums into a (3, 8, 128) VMEM accumulator:
         acc[0] = sum(sigmoid(x) * t)        (dice intersection)
         acc[1] = sum(sigmoid(x) + t)        (dice denominator)
         acc[2] = sum(elementwise BCE-with-logits)
       The cross-lane reduction to scalars happens in the wrapper."""
    i = pl.program_id(1)

    @pl.when(i == 0)
    def _init():
        acc_ref[...] = jnp.zeros_like(acc_ref)

    x = x_ref[...].astype(jnp.float32)
    t = t_ref[...].astype(jnp.float32)

    s = jax.nn.sigmoid(x)
    # Numerically stable BCE-with-logits, reusing the sigmoid for the log term:
    #   max(x,0) - x*t + log(1+exp(-|x|)) == max(x,0) - x*t - log(max(s, 1-s))
    # (max(s, 1-s) == sigmoid(|x|); no cancellation, one fewer exp/element).
    bce = jnp.maximum(x, 0.0) - x * t - jnp.log(jnp.maximum(s, 1.0 - s))

    rows, lanes = x_ref.shape
    k = rows // _SUBLANE

    def fold(v):
        # (rows, 128) -> (8, 128) using only elementwise VPU adds
        # (no cross-lane / XLU work inside the hot loop).
        return jnp.sum(v.reshape(k, _SUBLANE, _LANE), axis=0)

    def accumulate(sv, tv, bv):
        acc_ref[0] += fold(sv * tv)
        acc_ref[1] += fold(sv + tv)
        acc_ref[2] += fold(bv)

    if not need_mask:
        accumulate(s, t, bce)
    else:
        # Only the boundary block (and the clamp-duplicate block in the 2-way
        # split) pays the iota/compare/select mask; interior blocks take the
        # unmasked fast path.
        c = pl.program_id(0)
        base = (c * n_inner + i) * block_elems
        full = base + block_elems <= n_valid

        @pl.when(full)
        def _fast():
            accumulate(s, t, bce)

        @pl.when(jnp.logical_not(full))
        def _masked():
            r = jax.lax.broadcasted_iota(jnp.int32, (rows, lanes), 0)
            l = jax.lax.broadcasted_iota(jnp.int32, (rows, lanes), 1)
            valid = (base + r * lanes + l) < n_valid
            zero = jnp.zeros_like(s)
            accumulate(jnp.where(valid, s, zero),
                       jnp.where(valid, t, zero),
                       jnp.where(valid, bce, zero))

    @pl.when(i == pl.num_programs(1) - 1)
    def _finalize():
        o_ref[0] = acc_ref[...]


def _partial_sums_jnp(x, t):
    """Tiny (<128-element) tail: same three partial sums in plain jnp."""
    x = x.astype(jnp.float32)
    t = t.astype(jnp.float32)
    s = jax.nn.sigmoid(x)
    bce = jnp.maximum(x, 0.0) - x * t - jnp.log(jnp.maximum(s, 1.0 - s))
    return jnp.stack([jnp.sum(s * t), jnp.sum(s + t), jnp.sum(bce)])


def bce_dice_loss(logits, target, *, alpha, smooth=1.0, tile_rows=None):
    """Pallas equivalent of BCEDiceLoss(alpha, smooth).forward(logits, target)."""
    xf = jnp.reshape(logits, (-1,))
    tf = jnp.reshape(target, (-1,))
    n = xf.shape[0]

    default_tile_rows, vmem_limit, num_cores = _chip_defaults()
    if tile_rows is None:
        tile_rows = default_tile_rows

    mult = max(_sublane_multiple(xf.dtype), _sublane_multiple(tf.dtype))

    # Kernel consumes the 128-aligned prefix (zero-copy reshape when
    # n % 128 == 0, the common segmentation case); any sub-128 remainder is
    # summed with a tiny jnp expression instead of padding the whole tensor.
    rem = n % _LANE
    n_main = n - rem
    rows = n_main // _LANE

    sums = jnp.zeros((3,), jnp.float32)
    handled = 0

    if rows >= mult:
        handled = n_main
        if rem:
            # TODO(synk): rare unaligned case still copies the prefix; a
            # memory_space=pl.ANY manual-DMA variant would avoid it.
            xp, tp = xf[:n_main], tf[:n_main]
        else:
            xp, tp = xf, tf
        x2 = xp.reshape(rows, _LANE)
        t2 = tp.reshape(rows, _LANE)

        # Block rows: as large as possible up to tile_rows, rounded to the
        # dtype's sublane multiple.
        tr = min(int(tile_rows), rows)
        tr = max(mult, (tr // mult) * mult)

        n_blocks = -(-rows // tr)
        # Dual-TensorCore streaming only on v7x; 1-TC chips keep a trivial
        # size-1 leading axis (no clamp duplicate, no forced masking).
        num_splits = 2 if (num_cores == 2 and n_blocks >= 2) else 1
        n_inner = -(-n_blocks // num_splits)
        block_elems = tr * _LANE
        need_mask = (num_splits * n_inner * block_elems) != n_main

        if num_splits * n_inner == n_blocks:
            def in_idx(c, i):
                return (c * n_inner + i, 0)
        else:
            # Odd block count with the 2-way split: clamp so the trailing
            # nominal block re-reads the last valid block; its contribution is
            # masked to zero in the kernel (gated, so only that block pays).
            def in_idx(c, i):
                return (jnp.minimum(c * n_inner + i, n_blocks - 1), 0)

        kern = functools.partial(
            _bce_dice_kernel,
            n_valid=n_main,
            n_inner=n_inner,
            block_elems=block_elems,
            need_mask=need_mask,
        )

        # Optional triple-buffering: only worth it for long grids with small
        # blocks (keeps VMEM headroom on v7x for large blocks).
        block_bytes = block_elems * max(x2.dtype.itemsize, t2.dtype.itemsize)
        spec_kwargs = {}
        if n_blocks >= 4 and block_bytes <= (2 << 20):
            spec_kwargs["pipeline_mode"] = pl.Buffered(3)

        if num_splits == 2:
            dim_sems = (pltpu.CORE_PARALLEL, pltpu.ARBITRARY)
        else:
            dim_sems = (pltpu.ARBITRARY, pltpu.ARBITRARY)

        out_bytes = num_splits * 3 * _SUBLANE * _LANE * 4
        cost = pl.CostEstimate(
            flops=20 * n_main,
            transcendentals=2 * n_main,
            bytes_accessed=(x2.size * x2.dtype.itemsize
                            + t2.size * t2.dtype.itemsize + out_bytes),
        )

        partial_sums = pl.pallas_call(
            kern,
            out_shape=jax.ShapeDtypeStruct((num_splits, 3, _SUBLANE, _LANE),
                                           jnp.float32),
            grid_spec=pltpu.PrefetchScalarGridSpec(
                num_scalar_prefetch=0,
                grid=(num_splits, n_inner),
                in_specs=[
                    pl.BlockSpec((tr, _LANE), in_idx, **spec_kwargs),
                    pl.BlockSpec((tr, _LANE), in_idx, **spec_kwargs),
                ],
                out_specs=pl.BlockSpec((1, 3, _SUBLANE, _LANE),
                                       lambda c, i: (c, 0, 0, 0)),
                scratch_shapes=[pltpu.VMEM((3, _SUBLANE, _LANE), jnp.float32)],
            ),
            compiler_params=pltpu.CompilerParams(
                dimension_semantics=dim_sems,
                vmem_limit_bytes=vmem_limit,
            ),
            cost_estimate=cost,
        )(x2, t2)

        sums = sums + jnp.sum(partial_sums, axis=(0, 2, 3))   # tiny final reduce

    if handled != n:
        sums = sums + _partial_sums_jnp(xf[handled:], tf[handled:])

    inter, den, bce_sum = sums[0], sums[1], sums[2]
    dice = (2.0 * inter + smooth) / (den + smooth)
    bce_mean = bce_sum / n
    return alpha * bce_mean - jnp.log(dice)


def _ref_loss(logits, target, alpha, smooth):
    x = logits.astype(jnp.float32).reshape(-1)
    t = target.astype(jnp.float32).reshape(-1)
    s = jax.nn.sigmoid(x)
    inter = jnp.sum(s * t)
    dice = (2.0 * inter + smooth) / (jnp.sum(s) + jnp.sum(t) + smooth)
    bce = jnp.mean(jnp.maximum(x, 0.0) - x * t
                   + jnp.log1p(jnp.exp(-jnp.abs(x))))
    return alpha * bce - jnp.log(dice)


if __name__ == "__main__":
    key = jax.random.PRNGKey(0)
    k1, k2 = jax.random.split(key)
    # NCHW, matching the PyTorch module's typical segmentation inputs.
    x = jax.random.normal(k1, (2, 4, 16, 16), dtype=jnp.float32)
    t = (jax.random.uniform(k2, (2, 4, 16, 16)) > 0.5).astype(jnp.float32)

    alpha, smooth = 0.5, 1.0
    out = bce_dice_loss(x, t, alpha=alpha, smooth=smooth)
    out = jax.block_until_ready(out)

    ref = _ref_loss(x, t, alpha, smooth)
    assert jnp.allclose(out, ref, atol=1e-5, rtol=1e-5), (out, ref)
    print("KERNEL_OK")
</pallas_src>

<mosaic_0001>
module attributes {stable_mosaic.version = 11 : i64} {
  func.func @_bce_dice_kernel(%arg0: i32, %arg1: i32, %arg2: memref<16x128xf32, #tpu.memory_space<vmem>>, %arg3: memref<16x128xf32, #tpu.memory_space<vmem>>, %arg4: memref<1x3x8x128xf32, #tpu.memory_space<vmem>>, %arg5: memref<3x8x128xf32, #tpu.memory_space<vmem>>) attributes {dimension_semantics = [#tpu.dimension_semantics<arbitrary>, #tpu.dimension_semantics<arbitrary>], iteration_bounds = array<i64: 1, 1>, scalar_prefetch = 0 : i64, scratch_operands = 1 : i64, tpu.core_type = #tpu.core_type<tc>, window_params = [{transform_indices = @transform_0, window_bounds = array<i64: 16, 128>}, {transform_indices = @transform_1, window_bounds = array<i64: 16, 128>}, {transform_indices = @transform_2, window_bounds = array<i64: 1, 3, 8, 128>}]} {
    %c0_i32 = arith.constant 0 : i32
    %0 = arith.cmpi eq, %arg1, %c0_i32 : i32
    %1 = arith.extui %0 : i1 to i32
    %c0_i32_0 = arith.constant 0 : i32
    %2 = arith.cmpi ne, %1, %c0_i32_0 : i32
    scf.if %2 {
      %cst_27 = arith.constant 0.000000e+00 : f32
      %48 = vector.broadcast %cst_27 : f32 to vector<3x8x128xf32>
      %c0_28 = arith.constant 0 : index
      %c0_29 = arith.constant 0 : index
      %c0_30 = arith.constant 0 : index
      %49 = vector.load %arg5[%c0_28, %c0_29, %c0_30] : memref<3x8x128xf32, #tpu.memory_space<vmem>>, vector<3x8x128xf32>
      tpu.vector_store %arg5[%c0_28, %c0_29, %c0_30], %48 {strides = array<i32>} : memref<3x8x128xf32, #tpu.memory_space<vmem>>, vector<3x8x128xf32>,
    } else {
    }
    %c0 = arith.constant 0 : index
    %c0_1 = arith.constant 0 : index
    %3 = vector.load %arg2[%c0, %c0_1] : memref<16x128xf32, #tpu.memory_space<vmem>>, vector<16x128xf32>
    %c0_2 = arith.constant 0 : index
    %c0_3 = arith.constant 0 : index
    %4 = vector.load %arg3[%c0_2, %c0_3] : memref<16x128xf32, #tpu.memory_space<vmem>>, vector<16x128xf32>
    %5 = arith.negf %3 : vector<16x128xf32>
    %6 = math.exp %5 : vector<16x128xf32>
    %cst = arith.constant 1.000000e+00 : f32
    %7 = vector.broadcast %cst : f32 to vector<16x128xf32>
    %8 = arith.addf %7, %6 : vector<16x128xf32>
    %9 = arith.divf %7, %8 : vector<16x128xf32>
    %cst_4 = arith.constant 0.000000e+00 : f32
    %10 = vector.broadcast %cst_4 : f32 to vector<16x128xf32>
    %11 = arith.maximumf %3, %10 : vector<16x128xf32>
    %12 = arith.mulf %3, %4 : vector<16x128xf32>
    %13 = arith.subf %11, %12 : vector<16x128xf32>
    %cst_5 = arith.constant 1.000000e+00 : f32
    %14 = vector.broadcast %cst_5 : f32 to vector<16x128xf32>
    %15 = arith.subf %14, %9 : vector<16x128xf32>
    %16 = arith.maximumf %9, %15 : vector<16x128xf32>
    %17 = math.log %16 : vector<16x128xf32>
    %18 = arith.subf %13, %17 : vector<16x128xf32>
    %c0_6 = arith.constant 0 : index
    %c0_7 = arith.constant 0 : index
    %c0_8 = arith.constant 0 : index
    %19 = vector.load %arg5[%c0_6, %c0_7, %c0_8] : memref<3x8x128xf32, #tpu.memory_space<vmem>>, vector<1x8x128xf32>
    %20 = vector.shape_cast %19 : vector<1x8x128xf32> to vector<8x128xf32>
    %21 = arith.mulf %9, %4 : vector<16x128xf32>
    %22 = vector.shape_cast %21 : vector<16x128xf32> to vector<2x8x128xf32>
    %cst_9 = arith.constant dense<0.000000e+00> : vector<8x128xf32>
    %23 = vector.multi_reduction <add>, %22, %cst_9 [0] : vector<2x8x128xf32> to vector<8x128xf32>
    %24 = arith.addf %20, %23 : vector<8x128xf32>
    %c0_10 = arith.constant 0 : index
    %c0_11 = arith.constant 0 : index
    %c0_12 = arith.constant 0 : index
    %25 = vector.load %arg5[%c0_10, %c0_11, %c0_12] : memref<3x8x128xf32, #tpu.memory_space<vmem>>, vector<1x8x128xf32>
    %26 = vector.shape_cast %25 : vector<1x8x128xf32> to vector<8x128xf32>
    %27 = vector.shape_cast %24 : vector<8x128xf32> to vector<1x8x128xf32>
    tpu.vector_store %arg5[%c0_10, %c0_11, %c0_12], %27 {strides = array<i32>} : memref<3x8x128xf32, #tpu.memory_space<vmem>>, vector<1x8x128xf32>,
    %c1 = arith.constant 1 : index
    %c0_13 = arith.constant 0 : index
    %c0_14 = arith.constant 0 : index
    %28 = vector.load %arg5[%c1, %c0_13, %c0_14] : memref<3x8x128xf32, #tpu.memory_space<vmem>>, vector<1x8x128xf32>
    %29 = vector.shape_cast %28 : vector<1x8x128xf32> to vector<8x128xf32>
    %30 = arith.addf %9, %4 : vector<16x128xf32>
    %31 = vector.shape_cast %30 : vector<16x128xf32> to vector<2x8x128xf32>
    %cst_15 = arith.constant dense<0.000000e+00> : vector<8x128xf32>
    %32 = vector.multi_reduction <add>, %31, %cst_15 [0] : vector<2x8x128xf32> to vector<8x128xf32>
    %33 = arith.addf %29, %32 : vector<8x128xf32>
    %c1_16 = arith.constant 1 : index
    %c0_17 = arith.constant 0 : index
    %c0_18 = arith.constant 0 : index
    %34 = vector.load %arg5[%c1_16, %c0_17, %c0_18] : memref<3x8x128xf32, #tpu.memory_space<vmem>>, vector<1x8x128xf32>
    %35 = vector.shape_cast %34 : vector<1x8x128xf32> to vector<8x128xf32>
    %36 = vector.shape_cast %33 : vector<8x128xf32> to vector<1x8x128xf32>
    tpu.vector_store %arg5[%c1_16, %c0_17, %c0_18], %36 {strides = array<i32>} : memref<3x8x128xf32, #tpu.memory_space<vmem>>, vector<1x8x128xf32>,
    %c2 = arith.constant 2 : index
    %c0_19 = arith.constant 0 : index
    %c0_20 = arith.constant 0 : index
    %37 = vector.load %arg5[%c2, %c0_19, %c0_20] : memref<3x8x128xf32, #tpu.memory_space<vmem>>, vector<1x8x128xf32>
    %38 = vector.shape_cast %37 : vector<1x8x128xf32> to vector<8x128xf32>
    %39 = vector.shape_cast %18 : vector<16x128xf32> to vector<2x8x128xf32>
    %cst_21 = arith.constant dense<0.000000e+00> : vector<8x128xf32>
    %40 = vector.multi_reduction <add>, %39, %cst_21 [0] : vector<2x8x128xf32> to vector<8x128xf32>
    %41 = arith.addf %38, %40 : vector<8x128xf32>
    %c2_22 = arith.constant 2 : index
    %c0_23 = arith.constant 0 : index
    %c0_24 = arith.constant 0 : index
    %42 = vector.load %arg5[%c2_22, %c0_23, %c0_24] : memref<3x8x128xf32, #tpu.memory_space<vmem>>, vector<1x8x128xf32>
    %43 = vector.shape_cast %42 : vector<1x8x128xf32> to vector<8x128xf32>
    %44 = vector.shape_cast %41 : vector<8x128xf32> to vector<1x8x128xf32>
    tpu.vector_store %arg5[%c2_22, %c0_23, %c0_24], %44 {strides = array<i32>} : memref<3x8x128xf32, #tpu.memory_space<vmem>>, vector<1x8x128xf32>,
    %c0_i32_25 = arith.constant 0 : i32
    %45 = arith.cmpi eq, %arg1, %c0_i32_25 : i32
    %46 = arith.extui %45 : i1 to i32
    %c0_i32_26 = arith.constant 0 : i32
    %47 = arith.cmpi ne, %46, %c0_i32_26 : i32
    scf.if %47 {
      %c0_27 = arith.constant 0 : index
      %c0_28 = arith.constant 0 : index
      %c0_29 = arith.constant 0 : index
      %48 = vector.load %arg5[%c0_27, %c0_28, %c0_29] : memref<3x8x128xf32, #tpu.memory_space<vmem>>, vector<3x8x128xf32>
      %c0_30 = arith.constant 0 : index
      %c0_31 = arith.constant 0 : index
      %c0_32 = arith.constant 0 : index
      %c0_33 = arith.constant 0 : index
      %49 = vector.load %arg4[%c0_30, %c0_31, %c0_32, %c0_33] : memref<1x3x8x128xf32, #tpu.memory_space<vmem>>, vector<1x3x8x128xf32>
      %50 = vector.shape_cast %49 : vector<1x3x8x128xf32> to vector<3x8x128xf32>
      %51 = vector.shape_cast %48 : vector<3x8x128xf32> to vector<1x3x8x128xf32>
      tpu.vector_store %arg4[%c0_30, %c0_31, %c0_32, %c0_33], %51 {strides = array<i32>} : memref<1x3x8x128xf32, #tpu.memory_space<vmem>>, vector<1x3x8x128xf32>,
    } else {
    }
    return
  }
  func.func @transform_0(%arg0: i32, %arg1: i32) -> (i32, i32) {
    %c1_i32 = arith.constant 1 : i32
    %0 = arith.muli %arg0, %c1_i32 : i32
    %1 = arith.addi %0, %arg1 : i32
    %c0_i32 = arith.constant 0 : i32
    %c0_i32_0 = arith.constant 0 : i32
    return %1, %c0_i32 : i32, i32
  }
  func.func @transform_1(%arg0: i32, %arg1: i32) -> (i32, i32) {
    %c1_i32 = arith.constant 1 : i32
    %0 = arith.muli %arg0, %c1_i32 : i32
    %1 = arith.addi %0, %arg1 : i32
    %c0_i32 = arith.constant 0 : i32
    %c0_i32_0 = arith.constant 0 : i32
    return %1, %c0_i32 : i32, i32
  }
  func.func @transform_2(%arg0: i32, %arg1: i32) -> (i32, i32, i32, i32) {
    %c0_i32 = arith.constant 0 : i32
    %c0_i32_0 = arith.constant 0 : i32
    %c0_i32_1 = arith.constant 0 : i32
    %c0_i32_2 = arith.constant 0 : i32
    return %arg0, %c0_i32, %c0_i32_0, %c0_i32_1 : i32, i32, i32, i32
  }
}

</mosaic_0001>

<llo_original>
// kernel: tpu_custom_call.1
$region0: #{tpu_custom_call.1}
  #allocation0 [shape = 'u32[]', space=smem, size = 0x4, offset = 0x4, fixed_abs, tag = 'smem constant byte address 0x4 - core index']
  #allocation1 [shape = 'u32[144,128]{1,0:T(1,128)}', space=vmem, size = 0x12000, scoped, tag = 'internal scratch']
  #allocation2 [shape = 'f32[3,8,128]{2,1,0:T(8,128)}', space=vmem, size = 0x3000, scoped, tag = 'scratch operand']
  %s0 = inlined_call_operand.hbm [shape: f32[16,128], index: 0, kind: input, shape index: {}]
  %s1 = inlined_call_operand.hbm [shape: f32[16,128], index: 1, kind: input, shape index: {}]
  %s2 = inlined_call_operand.hbm [shape: f32[1,3,8,128], index: 2, kind: output, shape index: {}]
  %s3 = sld [smem:[#allocation0]]
  $region34: #{tpu_custom_call.1} parent=0
    _
  %s5 = ssub.s32 1, %s3
  %s6 = scalar_select 0, %s5, %s3
  $region1: #{tpu_custom_call.1} parent=0
    #allocation3 [shape = 'u8[8192]{0}', space=vmem, size = 0x2000, scoped, tag = 'input window, operand 0, single buffered']
    #allocation4 [shape = 's32[1]{0}', space=sflag, size = 0x4, scoped, tag = 'scoped memory for tpu_custom_call.1']
    #allocation5 [shape = 's32[1]{0}', space=sflag, size = 0x4, scoped, tag = 'scoped memory for tpu_custom_call.1']
    #allocation6 [shape = 'u8[8192]{0}', space=vmem, size = 0x2000, scoped, tag = 'input window, operand 1, single buffered']
    #allocation7 [shape = 's32[1]{0}', space=sflag, size = 0x4, scoped, tag = 'scoped memory for tpu_custom_call.1']
    #allocation8 [shape = 'u8[12288]{0}', space=vmem, size = 0x3000, scoped, tag = 'output window, operand 0, single buffered']
    %7 = vsyncpa [#allocation4], 0
    %8 = vsyncpa [#allocation7], 0
    %9 = vsyncpa [#allocation5], 0
    // Predicated region
    $region2: #{tpu_custom_call.1} parent=1 // pred_check
      _
    $region3: #{tpu_custom_call.1} parent=1 // pred_check_branch
      %11 = sbr.rel (0) target = $region5
    $region4: #{tpu_custom_call.1} parent=1 // pred_region
      %s12 = sadd.s32 0, 0
      %s13 = smul.u32 2, %s12
      %s15 = ssub.s32 256, 256
      %16 = vsyncadd [#allocation4], %s15
      %s17 = smul.addr %s13, 128
      %s18 = scalar_lea.hbm %s0, %s17
      %s19 = sshll.u32 [#allocation3], 4
      %s20 = int_to_ptr.vmem [resolvable:$true] %s19
      %25 = dma.hbm_to_vmem [thread:$0]  %s18, 256, %s20, [#allocation4], 128, 128, 8
    $region5: #{tpu_custom_call.1} parent=1 // pred_fallthru
      _
    // Predicated region
    $region6: #{tpu_custom_call.1} parent=1 // pred_check
      _
    $region7: #{tpu_custom_call.1} parent=1 // pred_check_branch
      %27 = sbr.rel (0) target = $region9
    $region8: #{tpu_custom_call.1} parent=1 // pred_region
      %s28 = sadd.s32 0, 0
      %s29 = smul.u32 2, %s28
      %s31 = ssub.s32 256, 256
      %32 = vsyncadd [#allocation7], %s31
      %s33 = smul.addr %s29, 128
      %s34 = scalar_lea.hbm %s1, %s33
      %s35 = sshll.u32 [#allocation6], 4
      %s36 = int_to_ptr.vmem [resolvable:$true] %s35
      %41 = dma.hbm_to_vmem [thread:$0]  %s34, 256, %s36, [#allocation7], 128, 128, 8
    $region9: #{tpu_custom_call.1} parent=1 // pred_fallthru
      _
    // Predicated region
    $region10: #{tpu_custom_call.1} parent=1 // pred_check
      _
    $region11: #{tpu_custom_call.1} parent=1 // pred_check_branch
      %43 = sbr.rel (0) target = $region13
    $region12: #{tpu_custom_call.1} parent=1 // pred_region
      %44 = dma.done [#allocation4], 256
    $region13: #{tpu_custom_call.1} parent=1 // pred_fallthru
      _
    // Predicated region
    $region14: #{tpu_custom_call.1} parent=1 // pred_check
      _
    $region15: #{tpu_custom_call.1} parent=1 // pred_check_branch
      %46 = sbr.rel (0) target = $region17
    $region16: #{tpu_custom_call.1} parent=1 // pred_region
      %47 = dma.done [#allocation7], 256
    $region17: #{tpu_custom_call.1} parent=1 // pred_fallthru
      _
    %s48 = sadd.s32 0, 0
    %s49 = smul.u32 2, %s48
    %s50 = sadd.s32 0, 0
    %s51 = smul.u32 2, %s50
    %p52 = scmp.eq.s32.totalorder 0, 0
    // Predicated region
    $region18: #{tpu_custom_call.1} parent=1 // pred_check
      %p53 = pneg %p52
    $region19: #{tpu_custom_call.1} parent=1 // pred_check_branch
      %55 = sbr.rel (%p53) target = $region21
    $region20: #{tpu_custom_call.1} parent=1 // pred_region
      %56 = vst [vmem:[#allocation2] sm:$0xff] 0.0
      %57 = vst [vmem:[#allocation2 + $0x8] sm:$0xff] 0.0
      %58 = vst [vmem:[#allocation2 + $0x10] sm:$0xff] 0.0
    $region21: #{tpu_custom_call.1} parent=1 // pred_fallthru
      _
    %v59 = vld [vmem:[#allocation3] sm:$0xff]
    %v60 = vld [vmem:[#allocation3 + $0x8] sm:$0xff]
    %v61 = vld [vmem:[#allocation6] sm:$0xff]
    %v62 = vld [vmem:[#allocation6 + $0x8] sm:$0xff]
    %v63 = vxor.u32 %v59, 2147483648
    %v64 = vxor.u32 %v60, 2147483648
    %v65 = vmul.f32 %v63, 1.442695
    %v66 = vpow.pop %v65
    %v67 = vmul.f32 %v64, 1.442695
    %v68 = vpow.pop %v67
    %v69 = vadd.f32 %v66, 1.0
    %v70 = vadd.f32 %v68, 1.0
    %v71 = vrcp.pop %v69
    %v72 = vmul.f32 1.0, %v71
    %v73 = vrcp.pop %v70
    %v74 = vmul.f32 1.0, %v73
    %v75 = vmax.f32 %v59, 0.0
    %v76 = vmax.f32 %v60, 0.0
    %v77 = vmul.f32 %v59, %v61
    %v78 = vmul.f32 %v60, %v62
    %v79 = vsub.f32 %v75, %v77
    %v80 = vsub.f32 %v76, %v78
    %v81 = vsub.f32 1.0, %v72
    %v82 = vsub.f32 1.0, %v74
    %v83 = vmax.f32 %v72, %v81
    %v84 = vmax.f32 %v74, %v82
    %v85 = vlog2.pop %v83
    %v86 = vmul.f32 %v85, 0.6931472
    %v87 = vlog2.pop %v84
    %v88 = vmul.f32 %v87, 0.6931472
    %v89 = vsub.f32 %v79, %v86
    %v90 = vsub.f32 %v80, %v88
    %v91 = vld [vmem:[#allocation2] sm:$0xff]
    %v92 = vmul.f32 %v72, %v61
    %v93 = vmul.f32 %v74, %v62
    %v94 = vadd.f32 %v92, %v93
    %v95 = vadd.f32 %v91, %v94
    %96 = vst [vmem:[#allocation2] sm:$0xff] %v95
    %s97 = scalar_lea.vmem [#allocation2], 8
    %v98 = vld [vmem:[%s97] sm:$0xff]
    %v99 = vadd.f32 %v72, %v61
    %v100 = vadd.f32 %v74, %v62
    %v101 = vadd.f32 %v99, %v100
    %v102 = vadd.f32 %v98, %v101
    %103 = vst [vmem:[%s97] sm:$0xff] %v102
    %s104 = scalar_lea.vmem [#allocation2], 16
    %v105 = vld [vmem:[%s104] sm:$0xff]
    %v106 = vadd.f32 %v89, %v90
    %v107 = vadd.f32 %v105, %v106
    %108 = vst [vmem:[%s104] sm:$0xff] %v107
    // Predicated region
    $region22: #{tpu_custom_call.1} parent=1 // pred_check
      %p109 = pneg %p52
    $region23: #{tpu_custom_call.1} parent=1 // pred_check_branch
      %111 = sbr.rel (%p109) target = $region25
    $region24: #{tpu_custom_call.1} parent=1 // pred_region
      %v112 = vld [vmem:[#allocation2] sm:$0xff]
      %v113 = vld [vmem:[#allocation2 + $0x8] sm:$0xff]
      %v114 = vld [vmem:[#allocation2 + $0x10] sm:$0xff]
      %115 = vst [vmem:[#allocation8] sm:$0xff] %v112
      %116 = vst [vmem:[#allocation8 + $0x8] sm:$0xff] %v113
      %117 = vst [vmem:[#allocation8 + $0x10] sm:$0xff] %v114
    $region25: #{tpu_custom_call.1} parent=1 // pred_fallthru
      _
    // Predicated region
    $region26: #{tpu_custom_call.1} parent=1 // pred_check
      _
    $region27: #{tpu_custom_call.1} parent=1 // pred_check_branch
      %119 = sbr.rel (0) target = $region29
    $region28: #{tpu_custom_call.1} parent=1 // pred_region
      %s121 = ssub.s32 384, 384
      %122 = vsyncadd [#allocation5], %s121
      %s123 = sshll.u32 [#allocation8], 4
      %s124 = int_to_ptr.vmem [resolvable:$true] %s123
      %129 = dma.vmem_to_hbm [thread:$0]  %s124, 384, %s2, [#allocation5], 128, 128, 8
    $region29: #{tpu_custom_call.1} parent=1 // pred_fallthru
      _
    // Predicated region
    $region30: #{tpu_custom_call.1} parent=1 // pred_check
      _
    $region31: #{tpu_custom_call.1} parent=1 // pred_check_branch
      %131 = sbr.rel (0) target = $region33
    $region32: #{tpu_custom_call.1} parent=1 // pred_region
      %132 = dma.done [#allocation5], 384
    $region33: #{tpu_custom_call.1} parent=1 // pred_fallthru
      _
    %133 = vsyncpa [#allocation4], 1
    %134 = vsyncpa [#allocation7], 1
    %135 = vsyncpa [#allocation5], 1

</llo_original>
